<compile_context>
chip_gen: v6e
topology: v6e:2x2x1
jax: 0.10.0
libtpu: 0.0.40
codegen_flags: <defaults>
</compile_context>

<pallas_src>
import jax
import jax.numpy as jnp
from jax.experimental import pallas as pl
from jax.experimental.pallas import tpu as pltpu

LANE = 128
MAX_TILE_M = 4096          # (2+1) * 4096 * 128 * 4 B = 6 MiB/step, x2 buffers = 12 MiB
_PALLAS_MIN_ROWS = 16384   # below this, launch/layout overhead dominates -> jnp path


def _mlp_kernel(params_ref, x_ref, o_ref):
    # params_ref : SMEM f32[9] = [W1[0,0], W1[0,1], W1[1,0], W1[1,1],
    #                             B1[0],   B1[1],   W2[0,0], W2[1,0], B2[0]]
    # x_ref      : VMEM (2, TILE_M, 128)  -- x_ref[f] = feature f, dense rows
    # o_ref      : VMEM (TILE_M, 128)     -- dense rows
    x0 = x_ref[0]                          # (TILE_M, 128)
    x1 = x_ref[1]                          # (TILE_M, 128)

    w1_00 = params_ref[0]
    w1_01 = params_ref[1]
    w1_10 = params_ref[2]
    w1_11 = params_ref[3]
    b1_0 = params_ref[4]
    b1_1 = params_ref[5]
    w2_0 = params_ref[6]
    w2_1 = params_ref[7]
    b2 = params_ref[8]

    # Hidden layer (2 units) as explicit VPU FMAs, then ReLU.
    y1_0 = jnp.maximum(x0 * w1_00 + x1 * w1_10 + b1_0, 0.0)
    y1_1 = jnp.maximum(x0 * w1_01 + x1 * w1_11 + b1_1, 0.0)

    # Output layer (-> 1 unit) + ReLU, stored lane- and sublane-dense.
    o_ref[...] = jnp.maximum(y1_0 * w2_0 + y1_1 * w2_1 + b2, 0.0)


def _choose_tile_m(m):
    """Rows-of-128 per grid step: >=2 steps when possible, capped for VMEM."""
    t = -(-m // 2)            # ceil(m / 2)  -> at least 2 grid steps
    t = -(-t // 8) * 8        # round up to a sublane multiple (8)
    return max(8, min(MAX_TILE_M, t))


def simplified_nn_dim2(inp, W1, B1, W2, B2):
    """Forward pass matching SimplifiedNN_dim2.forward."""
    x = inp.reshape(-1, 2).astype(jnp.float32)          # view(-1, 2)
    n = x.shape[0]

    W1f = W1.astype(jnp.float32)
    B1f = B1.astype(jnp.float32)
    W2f = W2.astype(jnp.float32)
    B2f = B2.astype(jnp.float32)

    if n < _PALLAS_MIN_ROWS:
        # Small-N fast path: a fused XLA elementwise graph beats any kernel
        # launch at this size.
        y1 = jnp.maximum(x @ W1f + B1f, 0.0)
        return jnp.maximum(y1 @ W2f + B2f, 0.0)

    # ---- Pallas streaming path (HBM-bound) ----
    n128 = -(-n // LANE) * LANE                          # pad rows to 128 only
    m = n128 // LANE                                     # number of 128-row groups
    tile_m = _choose_tile_m(m)
    grid = -(-m // tile_m)                               # ragged last block is OK

    # Feature-major, fully dense layout: (2, m, 128).
    xt = jnp.pad(x.T, ((0, 0), (0, n128 - n))).reshape(2, m, LANE)

    # Flatten all weights/biases into one SMEM scalar array (1 DMA, no padding).
    params = jnp.concatenate(
        [W1f.reshape(-1), B1f.reshape(-1), W2f.reshape(-1), B2f.reshape(-1)]
    )                                                    # f32[9]

    out = pl.pallas_call(
        _mlp_kernel,
        out_shape=jax.ShapeDtypeStruct((m, LANE), jnp.float32),
        grid=(grid,),
        in_specs=[
            pl.BlockSpec(memory_space=pltpu.MemorySpace.SMEM),        # params
            pl.BlockSpec((2, tile_m, LANE), lambda i: (0, i, 0)),     # x slab
        ],
        out_specs=pl.BlockSpec((tile_m, LANE), lambda i: (i, 0)),
        compiler_params=pltpu.CompilerParams(
            dimension_semantics=("parallel",),            # v7x: shard across 2 TCs
            vmem_limit_bytes=32 * 1024 * 1024,            # headroom (v5e default 16 MiB)
            allow_input_fusion=[False, True],             # let XLA fuse the transpose
        ),
    )(params, xt)

    # Back to the PyTorch output layout (N, 1), dropping lane padding.
    # (Padded lanes hold relu(relu(B1)*W2 + B2) garbage and are discarded here.)
    return out.reshape(-1)[:n].reshape(n, 1)


def _reference(inp, W1, B1, W2, B2):
    x = inp.reshape(-1, 2).astype(jnp.float32)
    y1 = jnp.maximum(x @ W1.astype(jnp.float32) + B1.astype(jnp.float32), 0.0)
    return jnp.maximum(y1 @ W2.astype(jnp.float32) + B2.astype(jnp.float32), 0.0)


if __name__ == "__main__":
    key = jax.random.PRNGKey(0)
    k_in1, k_in2, k_w1, k_b1, k_w2, k_b2 = jax.random.split(key, 6)

    dim1 = 2
    # Deterministic "randn"-style parameter init (module __init__ shapes).
    W1 = jax.random.normal(k_w1, (2, dim1), dtype=jnp.float32)
    B1 = jax.random.normal(k_b1, (dim1,), dtype=jnp.float32)
    W2 = jax.random.normal(k_w2, (dim1, 1), dtype=jnp.float32)
    B2 = jax.random.normal(k_b2, (1,), dtype=jnp.float32)

    # Case 1: tiny input (8, 8, 2) -> view(-1, 2) = 64 rows -> small-N fast path.
    inp_small = jax.random.normal(k_in1, (8, 8, 2), dtype=jnp.float32)
    out_small = jax.block_until_ready(simplified_nn_dim2(inp_small, W1, B1, W2, B2))
    ref_small = _reference(inp_small, W1, B1, W2, B2)
    assert out_small.shape == (inp_small.size // 2, 1), out_small.shape
    assert jnp.allclose(out_small, ref_small, atol=1e-5, rtol=1e-5), "small-N mismatch"

    # Case 2: larger input -> Pallas path (N = 65250 rows; exercises the
    # dense (2, M, 128) layout, a 2-step parallel grid, and the ragged last block).
    inp_big = jax.random.normal(k_in2, (250, 522), dtype=jnp.float32)
    out_big = jax.block_until_ready(simplified_nn_dim2(inp_big, W1, B1, W2, B2))
    ref_big = _reference(inp_big, W1, B1, W2, B2)
    assert out_big.shape == (inp_big.size // 2, 1), out_big.shape
    assert jnp.allclose(out_big, ref_big, atol=1e-5, rtol=1e-5), "Pallas-path mismatch"

    print("KERNEL_OK")
</pallas_src>

<mosaic_0001>
module attributes {stable_mosaic.version = 11 : i64} {
  func.func @_mlp_kernel(%arg0: i32, %arg1: memref<9xf32, #tpu.memory_space<smem>>, %arg2: memref<2x256x128xf32, #tpu.memory_space<vmem>>, %arg3: memref<256x128xf32, #tpu.memory_space<vmem>>) attributes {dimension_semantics = [#tpu.dimension_semantics<parallel>], iteration_bounds = array<i64: 2>, scalar_prefetch = 0 : i64, scratch_operands = 0 : i64, tpu.core_type = #tpu.core_type<tc>, window_params = [{transform_indices = @transform_0, window_bounds = array<i64: 9>}, {transform_indices = @transform_1, window_bounds = array<i64: 2, 256, 128>}, {transform_indices = @transform_2, window_bounds = array<i64: 256, 128>}]} {
    %c0 = arith.constant 0 : index
    %c0_0 = arith.constant 0 : index
    %c0_1 = arith.constant 0 : index
    %0 = vector.load %arg2[%c0, %c0_0, %c0_1] : memref<2x256x128xf32, #tpu.memory_space<vmem>>, vector<1x256x128xf32>
    %1 = vector.shape_cast %0 : vector<1x256x128xf32> to vector<256x128xf32>
    %c1 = arith.constant 1 : index
    %c0_2 = arith.constant 0 : index
    %c0_3 = arith.constant 0 : index
    %2 = vector.load %arg2[%c1, %c0_2, %c0_3] : memref<2x256x128xf32, #tpu.memory_space<vmem>>, vector<1x256x128xf32>
    %3 = vector.shape_cast %2 : vector<1x256x128xf32> to vector<256x128xf32>
    %c0_4 = arith.constant 0 : index
    %4 = memref.load %arg1[%c0_4] : memref<9xf32, #tpu.memory_space<smem>>
    %c1_5 = arith.constant 1 : index
    %5 = memref.load %arg1[%c1_5] : memref<9xf32, #tpu.memory_space<smem>>
    %c2 = arith.constant 2 : index
    %6 = memref.load %arg1[%c2] : memref<9xf32, #tpu.memory_space<smem>>
    %c3 = arith.constant 3 : index
    %7 = memref.load %arg1[%c3] : memref<9xf32, #tpu.memory_space<smem>>
    %c4 = arith.constant 4 : index
    %8 = memref.load %arg1[%c4] : memref<9xf32, #tpu.memory_space<smem>>
    %c5 = arith.constant 5 : index
    %9 = memref.load %arg1[%c5] : memref<9xf32, #tpu.memory_space<smem>>
    %c6 = arith.constant 6 : index
    %10 = memref.load %arg1[%c6] : memref<9xf32, #tpu.memory_space<smem>>
    %c7 = arith.constant 7 : index
    %11 = memref.load %arg1[%c7] : memref<9xf32, #tpu.memory_space<smem>>
    %c8 = arith.constant 8 : index
    %12 = memref.load %arg1[%c8] : memref<9xf32, #tpu.memory_space<smem>>
    %13 = vector.broadcast %4 : f32 to vector<256x128xf32>
    %14 = arith.mulf %1, %13 : vector<256x128xf32>
    %15 = vector.broadcast %6 : f32 to vector<256x128xf32>
    %16 = arith.mulf %3, %15 : vector<256x128xf32>
    %17 = arith.addf %14, %16 : vector<256x128xf32>
    %18 = vector.broadcast %8 : f32 to vector<256x128xf32>
    %19 = arith.addf %17, %18 : vector<256x128xf32>
    %cst = arith.constant 0.000000e+00 : f32
    %20 = vector.broadcast %cst : f32 to vector<256x128xf32>
    %21 = arith.maximumf %19, %20 : vector<256x128xf32>
    %22 = vector.broadcast %5 : f32 to vector<256x128xf32>
    %23 = arith.mulf %1, %22 : vector<256x128xf32>
    %24 = vector.broadcast %7 : f32 to vector<256x128xf32>
    %25 = arith.mulf %3, %24 : vector<256x128xf32>
    %26 = arith.addf %23, %25 : vector<256x128xf32>
    %27 = vector.broadcast %9 : f32 to vector<256x128xf32>
    %28 = arith.addf %26, %27 : vector<256x128xf32>
    %cst_6 = arith.constant 0.000000e+00 : f32
    %29 = vector.broadcast %cst_6 : f32 to vector<256x128xf32>
    %30 = arith.maximumf %28, %29 : vector<256x128xf32>
    %31 = vector.broadcast %10 : f32 to vector<256x128xf32>
    %32 = arith.mulf %21, %31 : vector<256x128xf32>
    %33 = vector.broadcast %11 : f32 to vector<256x128xf32>
    %34 = arith.mulf %30, %33 : vector<256x128xf32>
    %35 = arith.addf %32, %34 : vector<256x128xf32>
    %36 = vector.broadcast %12 : f32 to vector<256x128xf32>
    %37 = arith.addf %35, %36 : vector<256x128xf32>
    %cst_7 = arith.constant 0.000000e+00 : f32
    %38 = vector.broadcast %cst_7 : f32 to vector<256x128xf32>
    %39 = arith.maximumf %37, %38 : vector<256x128xf32>
    %c0_8 = arith.constant 0 : index
    %c0_9 = arith.constant 0 : index
    %40 = vector.load %arg3[%c0_8, %c0_9] : memref<256x128xf32, #tpu.memory_space<vmem>>, vector<256x128xf32>
    tpu.vector_store %arg3[%c0_8, %c0_9], %39 {strides = array<i32>} : memref<256x128xf32, #tpu.memory_space<vmem>>, vector<256x128xf32>,
    return
  }
  func.func @transform_0(%arg0: i32) -> i32 {
    %c0_i32 = arith.constant 0 : i32
    %c0_i32_0 = arith.constant 0 : i32
    return %c0_i32 : i32
  }
  func.func @transform_1(%arg0: i32) -> (i32, i32, i32) {
    %c0_i32 = arith.constant 0 : i32
    %c0_i32_0 = arith.constant 0 : i32
    %c0_i32_1 = arith.constant 0 : i32
    return %c0_i32, %arg0, %c0_i32_0 : i32, i32, i32
  }
  func.func @transform_2(%arg0: i32) -> (i32, i32) {
    %c0_i32 = arith.constant 0 : i32
    %c0_i32_0 = arith.constant 0 : i32
    return %arg0, %c0_i32 : i32, i32
  }
}

</mosaic_0001>

<llo_original>
// kernel: tpu_custom_call.1
$region0: #{tpu_custom_call.1}
  #allocation0 [shape = 'u32[]', space=smem, size = 0x4, offset = 0x4, fixed_abs, tag = 'smem constant byte address 0x4 - core index']
  #allocation1 [shape = 'u32[144,128]{1,0:T(1,128)}', space=vmem, size = 0x12000, scoped, tag = 'internal scratch']
  %s0 = inlined_call_operand.vmem [shape: f32[9], index: 0, kind: input, shape index: {}]
  %s1 = inlined_call_operand.vmem [shape: f32[2,510,128], index: 1, kind: input, shape index: {}]
  %s2 = inlined_call_operand.hbm [shape: f32[510,128], index: 2, kind: output, shape index: {}]
  %s3 = sld [smem:[#allocation0]]
  $region83: #{tpu_custom_call.1} parent=0
    _
  %s5 = ssub.s32 1, %s3
  %s6 = scalar_select 0, %s5, %s3
  $region1: #{tpu_custom_call.1} parent=0
    #allocation2 [shape = 'u8[512]{0}', space=smem, size = 0x200, scoped, tag = 'input window, operand 0, single buffered']
    #allocation3 [shape = 's32[2]{0}', space=sflag, size = 0x8, scoped, tag = 'scoped memory for tpu_custom_call.1']
    #allocation4 [shape = 's32[2]{0}', space=sflag, size = 0x8, scoped, tag = 'scoped memory for tpu_custom_call.1']
    #allocation5 [shape = 'u8[524288]{0}', space=vmem, size = 0x80000, scoped, tag = 'input window, operand 1']
    #allocation6 [shape = 'u8[262144]{0}', space=vmem, size = 0x40000, scoped, tag = 'output window, operand 0']
    %7 = vsyncpa [#allocation4], 0
    %8 = vsyncpa [#allocation3], 0
    %s9 = scalar_lea.sflag [#allocation3], 1
    %10 = vsyncpa %s9, 0
    loop: start=0, step=1, limit=4
    $region2: #{tpu_custom_call.1} parent=1 // loop_pre_header
      _
    $region3: #{tpu_custom_call.1} parent=1 // loop_header
      %s12 = sphi 0, %s16
      %p13 = scmp.ge.s32.totalorder %s12, 4
      %s20 = sphi 0, %s20
      %s22 = sphi 0, %s20
      %s23 = sphi 0, %s22
      %s37 = sphi 0, %s23
      %s43 = sphi 0, %s45
      %s46 = sphi 0, %s43
      %s47 = sphi 0, %s46
      %s63 = sphi 0, %s47
      %s69 = sphi 0, %s71
      %s72 = sphi 0, %s69
      %s73 = sphi 0, %s72
      %s89 = sphi 0, %s73
    $region4: #{tpu_custom_call.1} parent=1 // loop_header_branch
      %15 = sbr.rel (%p13) target = $region8
    $region5: #{tpu_custom_call.1} parent=1 // loop_body
      %s17 = ssub.s32 %s12, 1
      %s18 = ssub.s32 %s12, 2
      %s19 = sadd.s32 %s12, 1
      %s21 = sadd.s32 %s20, 1
      %p24 = scmp.eq.s32.totalorder %s12, 1
      %p25 = scmp.ne.s32.totalorder %s20, %s22
      %p26 = scmp.eq.s32.totalorder %s12, 0
      %p27 = por %p25, %p26
      %p28 = scmp.ne.s32.totalorder %s20, %s22
      %p29 = scmp.eq.s32.totalorder %s17, 1
      %p30 = por %p28, %p29
      %p31 = scmp.ne.s32.totalorder %s22, %s23
      %p32 = scmp.eq.s32.totalorder %s17, 0
      %p33 = por %p31, %p32
      %p34 = scmp.ne.s32.totalorder %s22, %s23
      %p35 = scmp.eq.s32.totalorder %s18, 1
      %p36 = por %p34, %p35
      %p38 = scmp.ne.s32.totalorder %s23, %s37
      %p39 = scmp.eq.s32.totalorder %s18, 0
      %p40 = por %p38, %p39
      %s41 = ssub.s32 %s12, %s19
      %p42 = scmp.eq.s32.totalorder %s41, 0
      %s44 = sadd.s32 %s43, 1
      %s45 = scalar_select %p42, %s43, %s44
      %p48 = pneg %p42
      %p49 = scmp.eq.s32.totalorder %s12, 1
      %p50 = por %p48, %p49
      %p51 = scmp.ne.s32.totalorder %s43, %s46
      %p52 = scmp.eq.s32.totalorder %s12, 0
      %p53 = por %p51, %p52
      %p54 = scmp.ne.s32.totalorder %s43, %s46
      %p55 = scmp.eq.s32.totalorder %s17, 1
      %p56 = por %p54, %p55
      %p57 = scmp.ne.s32.totalorder %s46, %s47
      %p58 = scmp.eq.s32.totalorder %s17, 0
      %p59 = por %p57, %p58
      %p60 = scmp.ne.s32.totalorder %s46, %s47
      %p61 = scmp.eq.s32.totalorder %s18, 1
      %p62 = por %p60, %p61
      %p64 = scmp.ne.s32.totalorder %s47, %s63
      %p65 = scmp.eq.s32.totalorder %s18, 0
      %p66 = por %p64, %p65
      %s67 = ssub.s32 %s12, %s19
      %p68 = scmp.eq.s32.totalorder %s67, 0
      %s70 = sadd.s32 %s69, 1
      %s71 = scalar_select %p68, %s69, %s70
      %p74 = pneg %p68
      %p75 = scmp.eq.s32.totalorder %s12, 1
      %p76 = por %p74, %p75
      %p77 = scmp.ne.s32.totalorder %s69, %s72
      %p78 = scmp.eq.s32.totalorder %s12, 0
      %p79 = por %p77, %p78
      %p80 = scmp.ne.s32.totalorder %s69, %s72
      %p81 = scmp.eq.s32.totalorder %s17, 1
      %p82 = por %p80, %p81
      %p83 = scmp.ne.s32.totalorder %s72, %s73
      %p84 = scmp.eq.s32.totalorder %s17, 0
      %p85 = por %p83, %p84
      %p86 = scmp.ne.s32.totalorder %s72, %s73
      %p87 = scmp.eq.s32.totalorder %s18, 1
      %p88 = por %p86, %p87
      %p90 = scmp.ne.s32.totalorder %s73, %s89
      %p91 = scmp.eq.s32.totalorder %s18, 0
      %p92 = por %p90, %p91
      %p93 = scmp.le.s32.totalorder 1, %s12
      %p94 = scmp.lt.s32.totalorder %s12, 3
      %p95 = pnand %p93, %p94
      %p96 = pneg %p95
      // Predicated region
      $region9: #{tpu_custom_call.1} parent=5 // pred_check
        _
      $region10: #{tpu_custom_call.1} parent=5 // pred_check_branch
        %98 = sbr.rel (%p95) target = $region12
      $region11: #{tpu_custom_call.1} parent=5 // pred_region
        %s99 = ssub.s32 %s12, 1
        // Predicated region
        $region13: #{tpu_custom_call.1} parent=11 // pred_check
          %p100 = pneg %p33
        $region14: #{tpu_custom_call.1} parent=11 // pred_check_branch
          %102 = sbr.rel (%p100) target = $region16
        $region15: #{tpu_custom_call.1} parent=11 // pred_region
          %s104 = ssub.s32 16, 16
          %105 = vsyncadd [#allocation4], %s104
          %s107 = sshll.u32 %s0, 4
          %s108 = int_to_ptr.vmem [resolvable:$true] %s107
          %110 = dma.vmem_to_smem %s108, 16, [#allocation2], [#allocation4]
        $region16: #{tpu_custom_call.1} parent=11 // pred_fallthru
          _
      $region12: #{tpu_custom_call.1} parent=5 // pred_fallthru
        _
      %p111 = scmp.lt.s32.totalorder %s12, 2
      // Predicated region
      $region17: #{tpu_custom_call.1} parent=5 // pred_check
        %p112 = pneg %p111
      $region18: #{tpu_custom_call.1} parent=5 // pred_check_branch
        %114 = sbr.rel (%p112) target = $region20
      $region19: #{tpu_custom_call.1} parent=5 // pred_region
        // Predicated region
        $region21: #{tpu_custom_call.1} parent=19 // pred_check
          %p115 = pneg %p53
        $region22: #{tpu_custom_call.1} parent=19 // pred_check_branch
          %117 = sbr.rel (%p115) target = $region24
        $region23: #{tpu_custom_call.1} parent=19 // pred_region
          %s118 = sand.u32 %s43, 1
          %s119 = sand.u32 %s43, 1
          %s120 = smul.addr %s119, 512
          %s121 = scalar_lea.vmem [#allocation5], %s120
          %s122 = smul.u32 32, %s12
          %s123 = smul.addr %s122, 8
          %s124 = scalar_lea.vmem %s1, %s123
          // Predicated region
          $region25: #{tpu_custom_call.1} parent=23 // pred_check
            _
          $region26: #{tpu_custom_call.1} parent=23 // pred_check_branch
            %126 = sbr.rel (0) target = $region28
          $region27: #{tpu_custom_call.1} parent=23 // pred_region
            // Predicated region
            $region29: #{tpu_custom_call.1} parent=27 // pred_check
              _
            $region30: #{tpu_custom_call.1} parent=27 // pred_check_branch
              %128 = sbr.rel (0) target = $region32
            $region31: #{tpu_custom_call.1} parent=27 // pred_region
              // Predicated region
              $region44: #{tpu_custom_call.1} parent=31 // pred_check
                _
              $region45: #{tpu_custom_call.1} parent=31 // pred_check_branch
                %270 = sbr.rel (0) target = $region47
              $region46: #{tpu_custom_call.1} parent=31 // pred_region
                loop: start=0, step=1, limit=1
                $region48: #{tpu_custom_call.1} parent=46 // loop_pre_header
                  _
                $region49: #{tpu_custom_call.1} parent=46 // loop_header
                  %s272 = sphi 0, %s276
                  %p273 = scmp.ge.s32.totalorder %s272, 1
                  %s277 = sphi %s124, %s124
                  %s278 = sphi %s121, %s121
                $region50: #{tpu_custom_call.1} parent=46 // loop_header_branch
                  %275 = sbr.rel (%p273) target = $region54
                $region51: #{tpu_custom_call.1} parent=46 // loop_body
                  %v279 = vld [vmem:[%s277] sm:$0xff]
                  %280 = vst [vmem:[%s278] sm:$0xff] %v279
                  %v281 = vld [vmem:[%s277 + $0x8] sm:$0xff]
                  %282 = vst [vmem:[%s278 + $0x8] sm:$0xff] %v281
                  %v283 = vld [vmem:[%s277 + $0x10] sm:$0xff]
                  %284 = vst [vmem:[%s278 + $0x10] sm:$0xff] %v283
                  %v285 = vld [vmem:[%s277 + $0x18] sm:$0xff]
                  %286 = vst [vmem:[%s278 + $0x18] sm:$0xff] %v285
                  %v287 = vld [vmem:[%s277 + $0x20] sm:$0xff]
                  %288 = vst [vmem:[%s278 + $0x20] sm:$0xff] %v287
                  %v289 = vld [vmem:[%s277 + $0x28] sm:$0xff]
                  %290 = vst [vmem:[%s278 + $0x28] sm:$0xff] %v289
                  %v291 = vld [vmem:[%s277 + $0x30] sm:$0xff]
                  %292 = vst [vmem:[%s278 + $0x30] sm:$0xff] %v291
                  %v293 = vld [vmem:[%s277 + $0x38] sm:$0xff]
                  %294 = vst [vmem:[%s278 + $0x38] sm:$0xff] %v293
                  %v295 = vld [vmem:[%s277 + $0x40] sm:$0xff]
                  %296 = vst [vmem:[%s278 + $0x40] sm:$0xff] %v295
                  %v297 = vld [vmem:[%s277 + $0x48] sm:$0xff]
                  %298 = vst [vmem:[%s278 + $0x48] sm:$0xff] %v297
                  %v299 = vld [vmem:[%s277 + $0x50] sm:$0xff]
                  %300 = vst [vmem:[%s278 + $0x50] sm:$0xff] %v299
                  %v301 = vld [vmem:[%s277 + $0x58] sm:$0xff]
                  %302 = vst [vmem:[%s278 + $0x58] sm:$0xff] %v301
                  %v303 = vld [vmem:[%s277 + $0x60] sm:$0xff]
                  %304 = vst [vmem:[%s278 + $0x60] sm:$0xff] %v303
                  %v305 = vld [vmem:[%s277 + $0x68] sm:$0xff]
                  %306 = vst [vmem:[%s278 + $0x68] sm:$0xff] %v305
                  %v307 = vld [vmem:[%s277 + $0x70] sm:$0xff]
                  %308 = vst [vmem:[%s278 + $0x70] sm:$0xff] %v307
                  %v309 = vld [vmem:[%s277 + $0x78] sm:$0xff]
                  %310 = vst [vmem:[%s278 + $0x78] sm:$0xff] %v309
                  %v311 = vld [vmem:[%s277 + $0x80] sm:$0xff]
                  %312 = vst [vmem:[%s278 + $0x80] sm:$0xff] %v311
                  %v313 = vld [vmem:[%s277 + $0x88] sm:$0xff]
                  %314 = vst [vmem:[%s278 + $0x88] sm:$0xff] %v313
                  %v315 = vld [vmem:[%s277 + $0x90] sm:$0xff]
                  %316 = vst [vmem:[%s278 + $0x90] sm:$0xff] %v315
                  %v317 = vld [vmem:[%s277 + $0x98] sm:$0xff]
                  %318 = vst [vmem:[%s278 + $0x98] sm:$0xff] %v317
                  %v319 = vld [vmem:[%s277 + $0xa0] sm:$0xff]
                  %320 = vst [vmem:[%s278 + $0xa0] sm:$0xff] %v319
                  %v321 = vld [vmem:[%s277 + $0xa8] sm:$0xff]
                  %322 = vst [vmem:[%s278 + $0xa8] sm:$0xff] %v321
                  %v323 = vld [vmem:[%s277 + $0xb0] sm:$0xff]
                  %324 = vst [vmem:[%s278 + $0xb0] sm:$0xff] %v323
                  %v325 = vld [vmem:[%s277 + $0xb8] sm:$0xff]
                  %326 = vst [vmem:[%s278 + $0xb8] sm:$0xff] %v325
                  %v327 = vld [vmem:[%s277 + $0xc0] sm:$0xff]
                  %328 = vst [vmem:[%s278 + $0xc0] sm:$0xff] %v327
                  %v329 = vld [vmem:[%s277 + $0xc8] sm:$0xff]
                  %330 = vst [vmem:[%s278 + $0xc8] sm:$0xff] %v329
                  %v331 = vld [vmem:[%s277 + $0xd0] sm:$0xff]
                  %332 = vst [vmem:[%s278 + $0xd0] sm:$0xff] %v331
                  %v333 = vld [vmem:[%s277 + $0xd8] sm:$0xff]
                  %334 = vst [vmem:[%s278 + $0xd8] sm:$0xff] %v333
                  %v335 = vld [vmem:[%s277 + $0xe0] sm:$0xff]
                  %336 = vst [vmem:[%s278 + $0xe0] sm:$0xff] %v335
                  %v337 = vld [vmem:[%s277 + $0xe8] sm:$0xff]
                  %338 = vst [vmem:[%s278 + $0xe8] sm:$0xff] %v337
                  %v339 = vld [vmem:[%s277 + $0xf0] sm:$0xff]
                  %340 = vst [vmem:[%s278 + $0xf0] sm:$0xff] %v339
                  %v341 = vld [vmem:[%s277 + $0xf8] sm:$0xff]
                  %342 = vst [vmem:[%s278 + $0xf8] sm:$0xff] %v341
                  %v343 = vld [vmem:[%s277 + $0x200] sm:$0xff]
                  %344 = vst [vmem:[%s278 + $0x100] sm:$0xff] %v343
                  %v345 = vld [vmem:[%s277 + $0x208] sm:$0xff]
                  %346 = vst [vmem:[%s278 + $0x108] sm:$0xff] %v345
                  %v347 = vld [vmem:[%s277 + $0x210] sm:$0xff]
                  %348 = vst [vmem:[%s278 + $0x110] sm:$0xff] %v347
                  %v349 = vld [vmem:[%s277 + $0x218] sm:$0xff]
                  %350 = vst [vmem:[%s278 + $0x118] sm:$0xff] %v349
                  %v351 = vld [vmem:[%s277 + $0x220] sm:$0xff]
                  %352 = vst [vmem:[%s278 + $0x120] sm:$0xff] %v351
                  %v353 = vld [vmem:[%s277 + $0x228] sm:$0xff]
                  %354 = vst [vmem:[%s278 + $0x128] sm:$0xff] %v353
                  %v355 = vld [vmem:[%s277 + $0x230] sm:$0xff]
                  %356 = vst [vmem:[%s278 + $0x130] sm:$0xff] %v355
                  %v357 = vld [vmem:[%s277 + $0x238] sm:$0xff]
                  %358 = vst [vmem:[%s278 + $0x138] sm:$0xff] %v357
                  %v359 = vld [vmem:[%s277 + $0x240] sm:$0xff]
                  %360 = vst [vmem:[%s278 + $0x140] sm:$0xff] %v359
                  %v361 = vld [vmem:[%s277 + $0x248] sm:$0xff]
                  %362 = vst [vmem:[%s278 + $0x148] sm:$0xff] %v361
                  %v363 = vld [vmem:[%s277 + $0x250] sm:$0xff]
                  %364 = vst [vmem:[%s278 + $0x150] sm:$0xff] %v363
                  %v365 = vld [vmem:[%s277 + $0x258] sm:$0xff]
                  %366 = vst [vmem:[%s278 + $0x158] sm:$0xff] %v365
                  %v367 = vld [vmem:[%s277 + $0x260] sm:$0xff]
                  %368 = vst [vmem:[%s278 + $0x160] sm:$0xff] %v367
                  %v369 = vld [vmem:[%s277 + $0x268] sm:$0xff]
                  %370 = vst [vmem:[%s278 + $0x168] sm:$0xff] %v369
                  %v371 = vld [vmem:[%s277 + $0x270] sm:$0xff]
                  %372 = vst [vmem:[%s278 + $0x170] sm:$0xff] %v371
                  %v373 = vld [vmem:[%s277 + $0x278] sm:$0xff]
                  %374 = vst [vmem:[%s278 + $0x178] sm:$0xff] %v373
                  %v375 = vld [vmem:[%s277 + $0x280] sm:$0xff]
                  %376 = vst [vmem:[%s278 + $0x180] sm:$0xff] %v375
                  %v377 = vld [vmem:[%s277 + $0x288] sm:$0xff]
                  %378 = vst [vmem:[%s278 + $0x188] sm:$0xff] %v377
                  %v379 = vld [vmem:[%s277 + $0x290] sm:$0xff]
                  %380 = vst [vmem:[%s278 + $0x190] sm:$0xff] %v379
                  %v381 = vld [vmem:[%s277 + $0x298] sm:$0xff]
                  %382 = vst [vmem:[%s278 + $0x198] sm:$0xff] %v381
                  %v383 = vld [vmem:[%s277 + $0x2a0] sm:$0xff]
                  %384 = vst [vmem:[%s278 + $0x1a0] sm:$0xff] %v383
                  %v385 = vld [vmem:[%s277 + $0x2a8] sm:$0xff]
                  %386 = vst [vmem:[%s278 + $0x1a8] sm:$0xff] %v385
                  %v387 = vld [vmem:[%s277 + $0x2b0] sm:$0xff]
                  %388 = vst [vmem:[%s278 + $0x1b0] sm:$0xff] %v387
                  %v389 = vld [vmem:[%s277 + $0x2b8] sm:$0xff]
                  %390 = vst [vmem:[%s278 + $0x1b8] sm:$0xff] %v389
                  %v391 = vld [vmem:[%s277 + $0x2c0] sm:$0xff]
                  %392 = vst [vmem:[%s278 + $0x1c0] sm:$0xff] %v391
                  %v393 = vld [vmem:[%s277 + $0x2c8] sm:$0xff]
                  %394 = vst [vmem:[%s278 + $0x1c8] sm:$0xff] %v393
                  %v395 = vld [vmem:[%s277 + $0x2d0] sm:$0xff]
                  %396 = vst [vmem:[%s278 + $0x1d0] sm:$0xff] %v395
                  %v397 = vld [vmem:[%s277 + $0x2d8] sm:$0xff]
                  %398 = vst [vmem:[%s278 + $0x1d8] sm:$0xff] %v397
                  %v399 = vld [vmem:[%s277 + $0x2e0] sm:$0xff]
                  %400 = vst [vmem:[%s278 + $0x1e0] sm:$0xff] %v399
                  %v401 = vld [vmem:[%s277 + $0x2e8] sm:$0xff]
                  %402 = vst [vmem:[%s278 + $0x1e8] sm:$0xff] %v401
                  %v403 = vld [vmem:[%s277 + $0x2f0] sm:$0xff]
                  %404 = vst [vmem:[%s278 + $0x1f0] sm:$0xff] %v403
                  %v405 = vld [vmem:[%s277 + $0x2f8] sm:$0xff]
                  %406 = vst [vmem:[%s278 + $0x1f8] sm:$0xff] %v405
                $region52: #{tpu_custom_call.1} parent=46 // loop_footer
                  %s276 = sadd.s32 1, %s272
                $region53: #{tpu_custom_call.1} parent=46 // loop_footer_branch
                  %271 = sbr.rel target = $region49
                $region54: #{tpu_custom_call.1} parent=46 // loop_exit
                  _
              $region47: #{tpu_custom_call.1} parent=31 // pred_fallthru
                _
              // Predicated region
              $region55: #{tpu_custom_call.1} parent=31 // pred_check
                _
              $region56: #{tpu_custom_call.1} parent=31 // pred_check_branch
                %408 = sbr.rel target = $region58
              $region57: #{tpu_custom_call.1} parent=31 // pred_region
                _
              $region58: #{tpu_custom_call.1} parent=31 // pred_fallthru
                _
            $region32: #{tpu_custom_call.1} parent=27 // pred_fallthru
              _
            // Predicated region
            $region33: #{tpu_custom_call.1} parent=27 // pred_check
              _
            $region34: #{tpu_custom_call.1} parent=27 // pred_check_branch
              %130 = sbr.rel target = $region36
            $region35: #{tpu_custom_call.1} parent=27 // pred_region
              %s132 = ssub.s32 256, 1
              loop: start=0, step=1, limit=1
              $region37: #{tpu_custom_call.1} parent=35 // loop_pre_header
                _
              $region38: #{tpu_custom_call.1} parent=35 // loop_header
                %s134 = sphi 0, %s138
                %p135 = scmp.ge.s32.totalorder %s134, 1
                %s139 = sphi %s124, %s124
                %s140 = sphi %s121, %s121
              $region39: #{tpu_custom_call.1} parent=35 // loop_header_branch
                %137 = sbr.rel (%p135) target = $region43
              $region40: #{tpu_custom_call.1} parent=35 // loop_body
                %v141 = vld [vmem:[%s139] sm:%s132]
                %142 = vst [vmem:[%s140] sm:%s132] %v141
                %v143 = vld [vmem:[%s139 + $0x8] sm:%s132]
                %144 = vst [vmem:[%s140 + $0x8] sm:%s132] %v143
                %v145 = vld [vmem:[%s139 + $0x10] sm:%s132]
                %146 = vst [vmem:[%s140 + $0x10] sm:%s132] %v145
                %v147 = vld [vmem:[%s139 + $0x18] sm:%s132]
                %148 = vst [vmem:[%s140 + $0x18] sm:%s132] %v147
                %v149 = vld [vmem:[%s139 + $0x20] sm:%s132]
                %150 = vst [vmem:[%s140 + $0x20] sm:%s132] %v149
                %v151 = vld [vmem:[%s139 + $0x28] sm:%s132]
                %152 = vst [vmem:[%s140 + $0x28] sm:%s132] %v151
                %v153 = vld [vmem:[%s139 + $0x30] sm:%s132]
                %154 = vst [vmem:[%s140 + $0x30] sm:%s132] %v153
                %v155 = vld [vmem:[%s139 + $0x38] sm:%s132]
                %156 = vst [vmem:[%s140 + $0x38] sm:%s132] %v155
                %v157 = vld [vmem:[%s139 + $0x40] sm:%s132]
                %158 = vst [vmem:[%s140 + $0x40] sm:%s132] %v157
                %v159 = vld [vmem:[%s139 + $0x48] sm:%s132]
                %160 = vst [vmem:[%s140 + $0x48] sm:%s132] %v159
                %v161 = vld [vmem:[%s139 + $0x50] sm:%s132]
                %162 = vst [vmem:[%s140 + $0x50] sm:%s132] %v161
                %v163 = vld [vmem:[%s139 + $0x58] sm:%s132]
                %164 = vst [vmem:[%s140 + $0x58] sm:%s132] %v163
                %v165 = vld [vmem:[%s139 + $0x60] sm:%s132]
                %166 = vst [vmem:[%s140 + $0x60] sm:%s132] %v165
                %v167 = vld [vmem:[%s139 + $0x68] sm:%s132]
                %168 = vst [vmem:[%s140 + $0x68] sm:%s132] %v167
                %v169 = vld [vmem:[%s139 + $0x70] sm:%s132]
                %170 = vst [vmem:[%s140 + $0x70] sm:%s132] %v169
                %v171 = vld [vmem:[%s139 + $0x78] sm:%s132]
                %172 = vst [vmem:[%s140 + $0x78] sm:%s132] %v171
                %v173 = vld [vmem:[%s139 + $0x80] sm:%s132]
                %174 = vst [vmem:[%s140 + $0x80] sm:%s132] %v173
                %v175 = vld [vmem:[%s139 + $0x88] sm:%s132]
                %176 = vst [vmem:[%s140 + $0x88] sm:%s132] %v175
                %v177 = vld [vmem:[%s139 + $0x90] sm:%s132]
                %178 = vst [vmem:[%s140 + $0x90] sm:%s132] %v177
                %v179 = vld [vmem:[%s139 + $0x98] sm:%s132]
                %180 = vst [vmem:[%s140 + $0x98] sm:%s132] %v179
                %v181 = vld [vmem:[%s139 + $0xa0] sm:%s132]
                %182 = vst [vmem:[%s140 + $0xa0] sm:%s132] %v181
                %v183 = vld [vmem:[%s139 + $0xa8] sm:%s132]
                %184 = vst [vmem:[%s140 + $0xa8] sm:%s132] %v183
                %v185 = vld [vmem:[%s139 + $0xb0] sm:%s132]
                %186 = vst [vmem:[%s140 + $0xb0] sm:%s132] %v185
                %v187 = vld [vmem:[%s139 + $0xb8] sm:%s132]
                %188 = vst [vmem:[%s140 + $0xb8] sm:%s132] %v187
                %v189 = vld [vmem:[%s139 + $0xc0] sm:%s132]
                %190 = vst [vmem:[%s140 + $0xc0] sm:%s132] %v189
                %v191 = vld [vmem:[%s139 + $0xc8] sm:%s132]
                %192 = vst [vmem:[%s140 + $0xc8] sm:%s132] %v191
                %v193 = vld [vmem:[%s139 + $0xd0] sm:%s132]
                %194 = vst [vmem:[%s140 + $0xd0] sm:%s132] %v193
                %v195 = vld [vmem:[%s139 + $0xd8] sm:%s132]
                %196 = vst [vmem:[%s140 + $0xd8] sm:%s132] %v195
                %v197 = vld [vmem:[%s139 + $0xe0] sm:%s132]
                %198 = vst [vmem:[%s140 + $0xe0] sm:%s132] %v197
                %v199 = vld [vmem:[%s139 + $0xe8] sm:%s132]
                %200 = vst [vmem:[%s140 + $0xe8] sm:%s132] %v199
                %v201 = vld [vmem:[%s139 + $0xf0] sm:%s132]
                %202 = vst [vmem:[%s140 + $0xf0] sm:%s132] %v201
                %v203 = vld [vmem:[%s139 + $0xf8] sm:%s132]
                %204 = vst [vmem:[%s140 + $0xf8] sm:%s132] %v203
                %v205 = vld [vmem:[%s139 + $0x200] sm:%s132]
                %206 = vst [vmem:[%s140 + $0x100] sm:%s132] %v205
                %v207 = vld [vmem:[%s139 + $0x208] sm:%s132]
                %208 = vst [vmem:[%s140 + $0x108] sm:%s132] %v207
                %v209 = vld [vmem:[%s139 + $0x210] sm:%s132]
                %210 = vst [vmem:[%s140 + $0x110] sm:%s132] %v209
                %v211 = vld [vmem:[%s139 + $0x218] sm:%s132]
                %212 = vst [vmem:[%s140 + $0x118] sm:%s132] %v211
                %v213 = vld [vmem:[%s139 + $0x220] sm:%s132]
                %214 = vst [vmem:[%s140 + $0x120] sm:%s132] %v213
                %v215 = vld [vmem:[%s139 + $0x228] sm:%s132]
                %216 = vst [vmem:[%s140 + $0x128] sm:%s132] %v215
                %v217 = vld [vmem:[%s139 + $0x230] sm:%s132]
                %218 = vst [vmem:[%s140 + $0x130] sm:%s132] %v217
                %v219 = vld [vmem:[%s139 + $0x238] sm:%s132]
                %220 = vst [vmem:[%s140 + $0x138] sm:%s132] %v219
                %v221 = vld [vmem:[%s139 + $0x240] sm:%s132]
                %222 = vst [vmem:[%s140 + $0x140] sm:%s132] %v221
                %v223 = vld [vmem:[%s139 + $0x248] sm:%s132]
                %224 = vst [vmem:[%s140 + $0x148] sm:%s132] %v223
                %v225 = vld [vmem:[%s139 + $0x250] sm:%s132]
                %226 = vst [vmem:[%s140 + $0x150] sm:%s132] %v225
                %v227 = vld [vmem:[%s139 + $0x258] sm:%s132]
                %228 = vst [vmem:[%s140 + $0x158] sm:%s132] %v227
                %v229 = vld [vmem:[%s139 + $0x260] sm:%s132]
                %230 = vst [vmem:[%s140 + $0x160] sm:%s132] %v229
                %v231 = vld [vmem:[%s139 + $0x268] sm:%s132]
                %232 = vst [vmem:[%s140 + $0x168] sm:%s132] %v231
                %v233 = vld [vmem:[%s139 + $0x270] sm:%s132]
                %234 = vst [vmem:[%s140 + $0x170] sm:%s132] %v233
                %v235 = vld [vmem:[%s139 + $0x278] sm:%s132]
                %236 = vst [vmem:[%s140 + $0x178] sm:%s132] %v235
                %v237 = vld [vmem:[%s139 + $0x280] sm:%s132]
                %238 = vst [vmem:[%s140 + $0x180] sm:%s132] %v237
                %v239 = vld [vmem:[%s139 + $0x288] sm:%s132]
                %240 = vst [vmem:[%s140 + $0x188] sm:%s132] %v239
                %v241 = vld [vmem:[%s139 + $0x290] sm:%s132]
                %242 = vst [vmem:[%s140 + $0x190] sm:%s132] %v241
                %v243 = vld [vmem:[%s139 + $0x298] sm:%s132]
                %244 = vst [vmem:[%s140 + $0x198] sm:%s132] %v243
                %v245 = vld [vmem:[%s139 + $0x2a0] sm:%s132]
                %246 = vst [vmem:[%s140 + $0x1a0] sm:%s132] %v245
                %v247 = vld [vmem:[%s139 + $0x2a8] sm:%s132]
                %248 = vst [vmem:[%s140 + $0x1a8] sm:%s132] %v247
                %v249 = vld [vmem:[%s139 + $0x2b0] sm:%s132]
                %250 = vst [vmem:[%s140 + $0x1b0] sm:%s132] %v249
                %v251 = vld [vmem:[%s139 + $0x2b8] sm:%s132]
                %252 = vst [vmem:[%s140 + $0x1b8] sm:%s132] %v251
                %v253 = vld [vmem:[%s139 + $0x2c0] sm:%s132]
                %254 = vst [vmem:[%s140 + $0x1c0] sm:%s132] %v253
                %v255 = vld [vmem:[%s139 + $0x2c8] sm:%s132]
                %256 = vst [vmem:[%s140 + $0x1c8] sm:%s132] %v255
                %v257 = vld [vmem:[%s139 + $0x2d0] sm:%s132]
                %258 = vst [vmem:[%s140 + $0x1d0] sm:%s132] %v257
                %v259 = vld [vmem:[%s139 + $0x2d8] sm:%s132]
                %260 = vst [vmem:[%s140 + $0x1d8] sm:%s132] %v259
                %v261 = vld [vmem:[%s139 + $0x2e0] sm:%s132]
                %262 = vst [vmem:[%s140 + $0x1e0] sm:%s132] %v261
                %v263 = vld [vmem:[%s139 + $0x2e8] sm:%s132]
                %264 = vst [vmem:[%s140 + $0x1e8] sm:%s132] %v263
                %v265 = vld [vmem:[%s139 + $0x2f0] sm:%s132]
                %266 = vst [vmem:[%s140 + $0x1f0] sm:%s132] %v265
                %v267 = vld [vmem:[%s139 + $0x2f8] sm:%s132]
                %268 = vst [vmem:[%s140 + $0x1f8] sm:%s132] %v267
              $region41: #{tpu_custom_call.1} parent=35 // loop_footer
                %s138 = sadd.s32 1, %s134
              $region42: #{tpu_custom_call.1} parent=35 // loop_footer_branch
                %133 = sbr.rel target = $region38
              $region43: #{tpu_custom_call.1} parent=35 // loop_exit
                _
            $region36: #{tpu_custom_call.1} parent=27 // pred_fallthru
              _
          $region28: #{tpu_custom_call.1} parent=23 // pred_fallthru
            _
          %409 = vnop
        $region24: #{tpu_custom_call.1} parent=19 // pred_fallthru
          _
      $region20: #{tpu_custom_call.1} parent=5 // pred_fallthru
        _
      %p410 = scmp.le.s32.totalorder 1, %s12
      %p411 = scmp.lt.s32.totalorder %s12, 3
      %p412 = pnand %p410, %p411
      %p413 = pneg %p412
      // Predicated region
      $region59: #{tpu_custom_call.1} parent=5 // pred_check
        _
      $region60: #{tpu_custom_call.1} parent=5 // pred_check_branch
        %415 = sbr.rel (%p412) target = $region62
      $region61: #{tpu_custom_call.1} parent=5 // pred_region
        %s416 = ssub.s32 %s12, 1
        // Predicated region
        $region63: #{tpu_custom_call.1} parent=61 // pred_check
          %p417 = pneg %p33
        $region64: #{tpu_custom_call.1} parent=61 // pred_check_branch
          %419 = sbr.rel (%p417) target = $region66
        $region65: #{tpu_custom_call.1} parent=61 // pred_region
          %420 = dma.done [#allocation4], 16
        $region66: #{tpu_custom_call.1} parent=61 // pred_fallthru
          _
        %s421 = sand.u32 %s46, 1
        %s422 = sand.u32 %s46, 1
        %s423 = smul.addr %s422, 512
        %s424 = scalar_lea.vmem [#allocation5], %s423
        // Predicated region
        $region67: #{tpu_custom_call.1} parent=61 // pred_check
          %p425 = pneg %p59
        $region68: #{tpu_custom_call.1} parent=61 // pred_check_branch
          %427 = sbr.rel (%p425) target = $region70
        $region69: #{tpu_custom_call.1} parent=61 // pred_region
          _
        $region70: #{tpu_custom_call.1} parent=61 // pred_fallthru
          _
        %428 = sfence
        %p429 = pneg %p33
        %p430 = pneg %p30
        %s431 = sand.u32 %s46, 1
        %s432 = sand.u32 %s46, 1
        %s433 = smul.addr %s432, 512
        %s434 = scalar_lea.vmem [#allocation5], %s433
        %p435 = pneg %p59
        %p436 = pneg %p56
        %p437 = pneg %p85
        %p438 = pneg %p82
        %s439 = sand.u32 %s72, 1
        %s440 = scalar_lea.sflag [#allocation3], %s439
        %s441 = sand.u32 %s72, 1
        %s442 = smul.addr %s441, 256
        %s443 = scalar_lea.vmem [#allocation6], %s442
        %s444 = smul.u32 32, %s17
        %s445 = smul.u32 32, %s17
        %v446 = vld [vmem:[%s424] sm:$0xff]
        %v447 = vld [vmem:[%s424 + $0x8] sm:$0xff]
        %v448 = vld [vmem:[%s424 + $0x10] sm:$0xff]
        %v449 = vld [vmem:[%s424 + $0x18] sm:$0xff]
        %v450 = vld [vmem:[%s424 + $0x20] sm:$0xff]
        %v451 = vld [vmem:[%s424 + $0x28] sm:$0xff]
        %v452 = vld [vmem:[%s424 + $0x30] sm:$0xff]
        %v453 = vld [vmem:[%s424 + $0x38] sm:$0xff]
        %v454 = vld [vmem:[%s424 + $0x40] sm:$0xff]
        %v455 = vld [vmem:[%s424 + $0x48] sm:$0xff]
        %v456 = vld [vmem:[%s424 + $0x50] sm:$0xff]
        %v457 = vld [vmem:[%s424 + $0x58] sm:$0xff]
        %v458 = vld [vmem:[%s424 + $0x60] sm:$0xff]
        %v459 = vld [vmem:[%s424 + $0x68] sm:$0xff]
        %v460 = vld [vmem:[%s424 + $0x70] sm:$0xff]
        %v461 = vld [vmem:[%s424 + $0x78] sm:$0xff]
        %v462 = vld [vmem:[%s424 + $0x80] sm:$0xff]
        %v463 = vld [vmem:[%s424 + $0x88] sm:$0xff]
        %v464 = vld [vmem:[%s424 + $0x90] sm:$0xff]
        %v465 = vld [vmem:[%s424 + $0x98] sm:$0xff]
        %v466 = vld [vmem:[%s424 + $0xa0] sm:$0xff]
        %v467 = vld [vmem:[%s424 + $0xa8] sm:$0xff]
        %v468 = vld [vmem:[%s424 + $0xb0] sm:$0xff]
        %v469 = vld [vmem:[%s424 + $0xb8] sm:$0xff]
        %v470 = vld [vmem:[%s424 + $0xc0] sm:$0xff]
        %v471 = vld [vmem:[%s424 + $0xc8] sm:$0xff]
        %v472 = vld [vmem:[%s424 + $0xd0] sm:$0xff]
        %v473 = vld [vmem:[%s424 + $0xd8] sm:$0xff]
        %v474 = vld [vmem:[%s424 + $0xe0] sm:$0xff]
        %v475 = vld [vmem:[%s424 + $0xe8] sm:$0xff]
        %v476 = vld [vmem:[%s424 + $0xf0] sm:$0xff]
        %v477 = vld [vmem:[%s424 + $0xf8] sm:$0xff]
        %s478 = scalar_lea.vmem %s424, 256 [#allocation5]
        %v479 = vld [vmem:[%s478] sm:$0xff]
        %v480 = vld [vmem:[%s478 + $0x8] sm:$0xff]
        %v481 = vld [vmem:[%s478 + $0x10] sm:$0xff]
        %v482 = vld [vmem:[%s478 + $0x18] sm:$0xff]
        %v483 = vld [vmem:[%s478 + $0x20] sm:$0xff]
        %v484 = vld [vmem:[%s478 + $0x28] sm:$0xff]
        %v485 = vld [vmem:[%s478 + $0x30] sm:$0xff]
        %v486 = vld [vmem:[%s478 + $0x38] sm:$0xff]
        %v487 = vld [vmem:[%s478 + $0x40] sm:$0xff]
        %v488 = vld [vmem:[%s478 + $0x48] sm:$0xff]
        %v489 = vld [vmem:[%s478 + $0x50] sm:$0xff]
        %v490 = vld [vmem:[%s478 + $0x58] sm:$0xff]
        %v491 = vld [vmem:[%s478 + $0x60] sm:$0xff]
        %v492 = vld [vmem:[%s478 + $0x68] sm:$0xff]
        %v493 = vld [vmem:[%s478 + $0x70] sm:$0xff]
        %v494 = vld [vmem:[%s478 + $0x78] sm:$0xff]
        %v495 = vld [vmem:[%s478 + $0x80] sm:$0xff]
        %v496 = vld [vmem:[%s478 + $0x88] sm:$0xff]
        %v497 = vld [vmem:[%s478 + $0x90] sm:$0xff]
        %v498 = vld [vmem:[%s478 + $0x98] sm:$0xff]
        %v499 = vld [vmem:[%s478 + $0xa0] sm:$0xff]
        %v500 = vld [vmem:[%s478 + $0xa8] sm:$0xff]
        %v501 = vld [vmem:[%s478 + $0xb0] sm:$0xff]
        %v502 = vld [vmem:[%s478 + $0xb8] sm:$0xff]
        %v503 = vld [vmem:[%s478 + $0xc0] sm:$0xff]
        %v504 = vld [vmem:[%s478 + $0xc8] sm:$0xff]
        %v505 = vld [vmem:[%s478 + $0xd0] sm:$0xff]
        %v506 = vld [vmem:[%s478 + $0xd8] sm:$0xff]
        %v507 = vld [vmem:[%s478 + $0xe0] sm:$0xff]
        %v508 = vld [vmem:[%s478 + $0xe8] sm:$0xff]
        %v509 = vld [vmem:[%s478 + $0xf0] sm:$0xff]
        %v510 = vld [vmem:[%s478 + $0xf8] sm:$0xff]
        %s511 = sld [smem:[#allocation2]]
        %s512 = sld [smem:[#allocation2 + $0x1]]
        %s513 = sld [smem:[#allocation2 + $0x2]]
        %s514 = sld [smem:[#allocation2 + $0x3]]
        %s515 = sld [smem:[#allocation2 + $0x4]]
        %s516 = sld [smem:[#allocation2 + $0x5]]
        %s517 = sld [smem:[#allocation2 + $0x6]]
        %s518 = sld [smem:[#allocation2 + $0x7]]
        %s519 = sld [smem:[#allocation2 + $0x8]]
        %v520 = vstv %s511
        %v521 = vmul.f32 %v446, %v520
        %v522 = vmul.f32 %v447, %v520
        %v523 = vmul.f32 %v448, %v520
        %v524 = vmul.f32 %v449, %v520
        %v525 = vmul.f32 %v450, %v520
        %v526 = vmul.f32 %v451, %v520
        %v527 = vmul.f32 %v452, %v520
        %v528 = vmul.f32 %v453, %v520
        %v529 = vmul.f32 %v454, %v520
        %v530 = vmul.f32 %v455, %v520
        %v531 = vmul.f32 %v456, %v520
        %v532 = vmul.f32 %v457, %v520
        %v533 = vmul.f32 %v458, %v520
        %v534 = vmul.f32 %v459, %v520
        %v535 = vmul.f32 %v460, %v520
        %v536 = vmul.f32 %v461, %v520
        %v537 = vmul.f32 %v462, %v520
        %v538 = vmul.f32 %v463, %v520
        %v539 = vmul.f32 %v464, %v520
        %v540 = vmul.f32 %v465, %v520
        %v541 = vmul.f32 %v466, %v520
        %v542 = vmul.f32 %v467, %v520
        %v543 = vmul.f32 %v468, %v520
        %v544 = vmul.f32 %v469, %v520
        %v545 = vmul.f32 %v470, %v520
        %v546 = vmul.f32 %v471, %v520
        %v547 = vmul.f32 %v472, %v520
        %v548 = vmul.f32 %v473, %v520
        %v549 = vmul.f32 %v474, %v520
        %v550 = vmul.f32 %v475, %v520
        %v551 = vmul.f32 %v476, %v520
        %v552 = vmul.f32 %v477, %v520
        %v553 = vstv %s513
        %v554 = vmul.f32 %v479, %v553
        %v555 = vmul.f32 %v480, %v553
        %v556 = vmul.f32 %v481, %v553
        %v557 = vmul.f32 %v482, %v553
        %v558 = vmul.f32 %v483, %v553
        %v559 = vmul.f32 %v484, %v553
        %v560 = vmul.f32 %v485, %v553
        %v561 = vmul.f32 %v486, %v553
        %v562 = vmul.f32 %v487, %v553
        %v563 = vmul.f32 %v488, %v553
        %v564 = vmul.f32 %v489, %v553
        %v565 = vmul.f32 %v490, %v553
        %v566 = vmul.f32 %v491, %v553
        %v567 = vmul.f32 %v492, %v553
        %v568 = vmul.f32 %v493, %v553
        %v569 = vmul.f32 %v494, %v553
        %v570 = vmul.f32 %v495, %v553
        %v571 = vmul.f32 %v496, %v553
        %v572 = vmul.f32 %v497, %v553
        %v573 = vmul.f32 %v498, %v553
        %v574 = vmul.f32 %v499, %v553
        %v575 = vmul.f32 %v500, %v553
        %v576 = vmul.f32 %v501, %v553
        %v577 = vmul.f32 %v502, %v553
        %v578 = vmul.f32 %v503, %v553
        %v579 = vmul.f32 %v504, %v553
        %v580 = vmul.f32 %v505, %v553
        %v581 = vmul.f32 %v506, %v553
        %v582 = vmul.f32 %v507, %v553
        %v583 = vmul.f32 %v508, %v553
        %v584 = vmul.f32 %v509, %v553
        %v585 = vmul.f32 %v510, %v553
        %v586 = vadd.f32 %v521, %v554
        %v587 = vadd.f32 %v522, %v555
        %v588 = vadd.f32 %v523, %v556
        %v589 = vadd.f32 %v524, %v557
        %v590 = vadd.f32 %v525, %v558
        %v591 = vadd.f32 %v526, %v559
        %v592 = vadd.f32 %v527, %v560
        %v593 = vadd.f32 %v528, %v561
        %v594 = vadd.f32 %v529, %v562
        %v595 = vadd.f32 %v530, %v563
        %v596 = vadd.f32 %v531, %v564
        %v597 = vadd.f32 %v532, %v565
        %v598 = vadd.f32 %v533, %v566
        %v599 = vadd.f32 %v534, %v567
        %v600 = vadd.f32 %v535, %v568
        %v601 = vadd.f32 %v536, %v569
        %v602 = vadd.f32 %v537, %v570
        %v603 = vadd.f32 %v538, %v571
        %v604 = vadd.f32 %v539, %v572
        %v605 = vadd.f32 %v540, %v573
        %v606 = vadd.f32 %v541, %v574
        %v607 = vadd.f32 %v542, %v575
        %v608 = vadd.f32 %v543, %v576
        %v609 = vadd.f32 %v544, %v577
        %v610 = vadd.f32 %v545, %v578
        %v611 = vadd.f32 %v546, %v579
        %v612 = vadd.f32 %v547, %v580
        %v613 = vadd.f32 %v548, %v581
        %v614 = vadd.f32 %v549, %v582
        %v615 = vadd.f32 %v550, %v583
        %v616 = vadd.f32 %v551, %v584
        %v617 = vadd.f32 %v552, %v585
        %v618 = vstv %s515
        %v619 = vadd.f32 %v586, %v618
        %v620 = vadd.f32 %v587, %v618
        %v621 = vadd.f32 %v588, %v618
        %v622 = vadd.f32 %v589, %v618
        %v623 = vadd.f32 %v590, %v618
        %v624 = vadd.f32 %v591, %v618
        %v625 = vadd.f32 %v592, %v618
        %v626 = vadd.f32 %v593, %v618
        %v627 = vadd.f32 %v594, %v618
        %v628 = vadd.f32 %v595, %v618
        %v629 = vadd.f32 %v596, %v618
        %v630 = vadd.f32 %v597, %v618
        %v631 = vadd.f32 %v598, %v618
        %v632 = vadd.f32 %v599, %v618
        %v633 = vadd.f32 %v600, %v618
        %v634 = vadd.f32 %v601, %v618
        %v635 = vadd.f32 %v602, %v618
        %v636 = vadd.f32 %v603, %v618
        %v637 = vadd.f32 %v604, %v618
        %v638 = vadd.f32 %v605, %v618
        %v639 = vadd.f32 %v606, %v618
        %v640 = vadd.f32 %v607, %v618
        %v641 = vadd.f32 %v608, %v618
        %v642 = vadd.f32 %v609, %v618
        %v643 = vadd.f32 %v610, %v618
        %v644 = vadd.f32 %v611, %v618
        %v645 = vadd.f32 %v612, %v618
        %v646 = vadd.f32 %v613, %v618
        %v647 = vadd.f32 %v614, %v618
        %v648 = vadd.f32 %v615, %v618
        %v649 = vadd.f32 %v616, %v618
        %v650 = vadd.f32 %v617, %v618
        %v651 = vmax.f32 %v619, 0.0
        %v652 = vmax.f32 %v620, 0.0
        %v653 = vmax.f32 %v621, 0.0
        %v654 = vmax.f32 %v622, 0.0
        %v655 = vmax.f32 %v623, 0.0
        %v656 = vmax.f32 %v624, 0.0
        %v657 = vmax.f32 %v625, 0.0
        %v658 = vmax.f32 %v626, 0.0
        %v659 = vmax.f32 %v627, 0.0
        %v660 = vmax.f32 %v628, 0.0
        %v661 = vmax.f32 %v629, 0.0
        %v662 = vmax.f32 %v630, 0.0
        %v663 = vmax.f32 %v631, 0.0
        %v664 = vmax.f32 %v632, 0.0
        %v665 = vmax.f32 %v633, 0.0
        %v666 = vmax.f32 %v634, 0.0
        %v667 = vmax.f32 %v635, 0.0
        %v668 = vmax.f32 %v636, 0.0
        %v669 = vmax.f32 %v637, 0.0
        %v670 = vmax.f32 %v638, 0.0
        %v671 = vmax.f32 %v639, 0.0
        %v672 = vmax.f32 %v640, 0.0
        %v673 = vmax.f32 %v641, 0.0
        %v674 = vmax.f32 %v642, 0.0
        %v675 = vmax.f32 %v643, 0.0
        %v676 = vmax.f32 %v644, 0.0
        %v677 = vmax.f32 %v645, 0.0
        %v678 = vmax.f32 %v646, 0.0
        %v679 = vmax.f32 %v647, 0.0
        %v680 = vmax.f32 %v648, 0.0
        %v681 = vmax.f32 %v649, 0.0
        %v682 = vmax.f32 %v650, 0.0
        %v683 = vstv %s512
        %v684 = vmul.f32 %v446, %v683
        %v685 = vmul.f32 %v447, %v683
        %v686 = vmul.f32 %v448, %v683
        %v687 = vmul.f32 %v449, %v683
        %v688 = vmul.f32 %v450, %v683
        %v689 = vmul.f32 %v451, %v683
        %v690 = vmul.f32 %v452, %v683
        %v691 = vmul.f32 %v453, %v683
        %v692 = vmul.f32 %v454, %v683
        %v693 = vmul.f32 %v455, %v683
        %v694 = vmul.f32 %v456, %v683
        %v695 = vmul.f32 %v457, %v683
        %v696 = vmul.f32 %v458, %v683
        %v697 = vmul.f32 %v459, %v683
        %v698 = vmul.f32 %v460, %v683
        %v699 = vmul.f32 %v461, %v683
        %v700 = vmul.f32 %v462, %v683
        %v701 = vmul.f32 %v463, %v683
        %v702 = vmul.f32 %v464, %v683
        %v703 = vmul.f32 %v465, %v683
        %v704 = vmul.f32 %v466, %v683
        %v705 = vmul.f32 %v467, %v683
        %v706 = vmul.f32 %v468, %v683
        %v707 = vmul.f32 %v469, %v683
        %v708 = vmul.f32 %v470, %v683
        %v709 = vmul.f32 %v471, %v683
        %v710 = vmul.f32 %v472, %v683
        %v711 = vmul.f32 %v473, %v683
        %v712 = vmul.f32 %v474, %v683
        %v713 = vmul.f32 %v475, %v683
        %v714 = vmul.f32 %v476, %v683
        %v715 = vmul.f32 %v477, %v683
        %v716 = vstv %s514
        %v717 = vmul.f32 %v479, %v716
        %v718 = vmul.f32 %v480, %v716
        %v719 = vmul.f32 %v481, %v716
        %v720 = vmul.f32 %v482, %v716
        %v721 = vmul.f32 %v483, %v716
        %v722 = vmul.f32 %v484, %v716
        %v723 = vmul.f32 %v485, %v716
        %v724 = vmul.f32 %v486, %v716
        %v725 = vmul.f32 %v487, %v716
        %v726 = vmul.f32 %v488, %v716
        %v727 = vmul.f32 %v489, %v716
        %v728 = vmul.f32 %v490, %v716
        %v729 = vmul.f32 %v491, %v716
        %v730 = vmul.f32 %v492, %v716
        %v731 = vmul.f32 %v493, %v716
        %v732 = vmul.f32 %v494, %v716
        %v733 = vmul.f32 %v495, %v716
        %v734 = vmul.f32 %v496, %v716
        %v735 = vmul.f32 %v497, %v716
        %v736 = vmul.f32 %v498, %v716
        %v737 = vmul.f32 %v499, %v716
        %v738 = vmul.f32 %v500, %v716
        %v739 = vmul.f32 %v501, %v716
        %v740 = vmul.f32 %v502, %v716
        %v741 = vmul.f32 %v503, %v716
        %v742 = vmul.f32 %v504, %v716
        %v743 = vmul.f32 %v505, %v716
        %v744 = vmul.f32 %v506, %v716
        %v745 = vmul.f32 %v507, %v716
        %v746 = vmul.f32 %v508, %v716
        %v747 = vmul.f32 %v509, %v716
        %v748 = vmul.f32 %v510, %v716
        %v749 = vadd.f32 %v684, %v717
        %v750 = vadd.f32 %v685, %v718
        %v751 = vadd.f32 %v686, %v719
        %v752 = vadd.f32 %v687, %v720
        %v753 = vadd.f32 %v688, %v721
        %v754 = vadd.f32 %v689, %v722
        %v755 = vadd.f32 %v690, %v723
        %v756 = vadd.f32 %v691, %v724
        %v757 = vadd.f32 %v692, %v725
        %v758 = vadd.f32 %v693, %v726
        %v759 = vadd.f32 %v694, %v727
        %v760 = vadd.f32 %v695, %v728
        %v761 = vadd.f32 %v696, %v729
        %v762 = vadd.f32 %v697, %v730
        %v763 = vadd.f32 %v698, %v731
        %v764 = vadd.f32 %v699, %v732
        %v765 = vadd.f32 %v700, %v733
        %v766 = vadd.f32 %v701, %v734
        %v767 = vadd.f32 %v702, %v735
        %v768 = vadd.f32 %v703, %v736
        %v769 = vadd.f32 %v704, %v737
        %v770 = vadd.f32 %v705, %v738
        %v771 = vadd.f32 %v706, %v739
        %v772 = vadd.f32 %v707, %v740
        %v773 = vadd.f32 %v708, %v741
        %v774 = vadd.f32 %v709, %v742
        %v775 = vadd.f32 %v710, %v743
        %v776 = vadd.f32 %v711, %v744
        %v777 = vadd.f32 %v712, %v745
        %v778 = vadd.f32 %v713, %v746
        %v779 = vadd.f32 %v714, %v747
        %v780 = vadd.f32 %v715, %v748
        %v781 = vstv %s516
        %v782 = vadd.f32 %v749, %v781
        %v783 = vadd.f32 %v750, %v781
        %v784 = vadd.f32 %v751, %v781
        %v785 = vadd.f32 %v752, %v781
        %v786 = vadd.f32 %v753, %v781
        %v787 = vadd.f32 %v754, %v781
        %v788 = vadd.f32 %v755, %v781
        %v789 = vadd.f32 %v756, %v781
        %v790 = vadd.f32 %v757, %v781
        %v791 = vadd.f32 %v758, %v781
        %v792 = vadd.f32 %v759, %v781
        %v793 = vadd.f32 %v760, %v781
        %v794 = vadd.f32 %v761, %v781
        %v795 = vadd.f32 %v762, %v781
        %v796 = vadd.f32 %v763, %v781
        %v797 = vadd.f32 %v764, %v781
        %v798 = vadd.f32 %v765, %v781
        %v799 = vadd.f32 %v766, %v781
        %v800 = vadd.f32 %v767, %v781
        %v801 = vadd.f32 %v768, %v781
        %v802 = vadd.f32 %v769, %v781
        %v803 = vadd.f32 %v770, %v781
        %v804 = vadd.f32 %v771, %v781
        %v805 = vadd.f32 %v772, %v781
        %v806 = vadd.f32 %v773, %v781
        %v807 = vadd.f32 %v774, %v781
        %v808 = vadd.f32 %v775, %v781
        %v809 = vadd.f32 %v776, %v781
        %v810 = vadd.f32 %v777, %v781
        %v811 = vadd.f32 %v778, %v781
        %v812 = vadd.f32 %v779, %v781
        %v813 = vadd.f32 %v780, %v781
        %v814 = vmax.f32 %v782, 0.0
        %v815 = vmax.f32 %v783, 0.0
        %v816 = vmax.f32 %v784, 0.0
        %v817 = vmax.f32 %v785, 0.0
        %v818 = vmax.f32 %v786, 0.0
        %v819 = vmax.f32 %v787, 0.0
        %v820 = vmax.f32 %v788, 0.0
        %v821 = vmax.f32 %v789, 0.0
        %v822 = vmax.f32 %v790, 0.0
        %v823 = vmax.f32 %v791, 0.0
        %v824 = vmax.f32 %v792, 0.0
        %v825 = vmax.f32 %v793, 0.0
        %v826 = vmax.f32 %v794, 0.0
        %v827 = vmax.f32 %v795, 0.0
        %v828 = vmax.f32 %v796, 0.0
        %v829 = vmax.f32 %v797, 0.0
        %v830 = vmax.f32 %v798, 0.0
        %v831 = vmax.f32 %v799, 0.0
        %v832 = vmax.f32 %v800, 0.0
        %v833 = vmax.f32 %v801, 0.0
        %v834 = vmax.f32 %v802, 0.0
        %v835 = vmax.f32 %v803, 0.0
        %v836 = vmax.f32 %v804, 0.0
        %v837 = vmax.f32 %v805, 0.0
        %v838 = vmax.f32 %v806, 0.0
        %v839 = vmax.f32 %v807, 0.0
        %v840 = vmax.f32 %v808, 0.0
        %v841 = vmax.f32 %v809, 0.0
        %v842 = vmax.f32 %v810, 0.0
        %v843 = vmax.f32 %v811, 0.0
        %v844 = vmax.f32 %v812, 0.0
        %v845 = vmax.f32 %v813, 0.0
        %v846 = vstv %s517
        %v847 = vmul.f32 %v651, %v846
        %v848 = vmul.f32 %v652, %v846
        %v849 = vmul.f32 %v653, %v846
        %v850 = vmul.f32 %v654, %v846
        %v851 = vmul.f32 %v655, %v846
        %v852 = vmul.f32 %v656, %v846
        %v853 = vmul.f32 %v657, %v846
        %v854 = vmul.f32 %v658, %v846
        %v855 = vmul.f32 %v659, %v846
        %v856 = vmul.f32 %v660, %v846
        %v857 = vmul.f32 %v661, %v846
        %v858 = vmul.f32 %v662, %v846
        %v859 = vmul.f32 %v663, %v846
        %v860 = vmul.f32 %v664, %v846
        %v861 = vmul.f32 %v665, %v846
        %v862 = vmul.f32 %v666, %v846
        %v863 = vmul.f32 %v667, %v846
        %v864 = vmul.f32 %v668, %v846
        %v865 = vmul.f32 %v669, %v846
        %v866 = vmul.f32 %v670, %v846
        %v867 = vmul.f32 %v671, %v846
        %v868 = vmul.f32 %v672, %v846
        %v869 = vmul.f32 %v673, %v846
        %v870 = vmul.f32 %v674, %v846
        %v871 = vmul.f32 %v675, %v846
        %v872 = vmul.f32 %v676, %v846
        %v873 = vmul.f32 %v677, %v846
        %v874 = vmul.f32 %v678, %v846
        %v875 = vmul.f32 %v679, %v846
        %v876 = vmul.f32 %v680, %v846
        %v877 = vmul.f32 %v681, %v846
        %v878 = vmul.f32 %v682, %v846
        %v879 = vstv %s518
        %v880 = vmul.f32 %v814, %v879
        %v881 = vmul.f32 %v815, %v879
        %v882 = vmul.f32 %v816, %v879
        %v883 = vmul.f32 %v817, %v879
        %v884 = vmul.f32 %v818, %v879
        %v885 = vmul.f32 %v819, %v879
        %v886 = vmul.f32 %v820, %v879
        %v887 = vmul.f32 %v821, %v879
        %v888 = vmul.f32 %v822, %v879
        %v889 = vmul.f32 %v823, %v879
        %v890 = vmul.f32 %v824, %v879
        %v891 = vmul.f32 %v825, %v879
        %v892 = vmul.f32 %v826, %v879
        %v893 = vmul.f32 %v827, %v879
        %v894 = vmul.f32 %v828, %v879
        %v895 = vmul.f32 %v829, %v879
        %v896 = vmul.f32 %v830, %v879
        %v897 = vmul.f32 %v831, %v879
        %v898 = vmul.f32 %v832, %v879
        %v899 = vmul.f32 %v833, %v879
        %v900 = vmul.f32 %v834, %v879
        %v901 = vmul.f32 %v835, %v879
        %v902 = vmul.f32 %v836, %v879
        %v903 = vmul.f32 %v837, %v879
        %v904 = vmul.f32 %v838, %v879
        %v905 = vmul.f32 %v839, %v879
        %v906 = vmul.f32 %v840, %v879
        %v907 = vmul.f32 %v841, %v879
        %v908 = vmul.f32 %v842, %v879
        %v909 = vmul.f32 %v843, %v879
        %v910 = vmul.f32 %v844, %v879
        %v911 = vmul.f32 %v845, %v879
        %v912 = vadd.f32 %v847, %v880
        %v913 = vadd.f32 %v848, %v881
        %v914 = vadd.f32 %v849, %v882
        %v915 = vadd.f32 %v850, %v883
        %v916 = vadd.f32 %v851, %v884
        %v917 = vadd.f32 %v852, %v885
        %v918 = vadd.f32 %v853, %v886
        %v919 = vadd.f32 %v854, %v887
        %v920 = vadd.f32 %v855, %v888
        %v921 = vadd.f32 %v856, %v889
        %v922 = vadd.f32 %v857, %v890
        %v923 = vadd.f32 %v858, %v891
        %v924 = vadd.f32 %v859, %v892
        %v925 = vadd.f32 %v860, %v893
        %v926 = vadd.f32 %v861, %v894
        %v927 = vadd.f32 %v862, %v895
        %v928 = vadd.f32 %v863, %v896
        %v929 = vadd.f32 %v864, %v897
        %v930 = vadd.f32 %v865, %v898
        %v931 = vadd.f32 %v866, %v899
        %v932 = vadd.f32 %v867, %v900
        %v933 = vadd.f32 %v868, %v901
        %v934 = vadd.f32 %v869, %v902
        %v935 = vadd.f32 %v870, %v903
        %v936 = vadd.f32 %v871, %v904
        %v937 = vadd.f32 %v872, %v905
        %v938 = vadd.f32 %v873, %v906
        %v939 = vadd.f32 %v874, %v907
        %v940 = vadd.f32 %v875, %v908
        %v941 = vadd.f32 %v876, %v909
        %v942 = vadd.f32 %v877, %v910
        %v943 = vadd.f32 %v878, %v911
        %v944 = vstv %s519
        %v945 = vadd.f32 %v912, %v944
        %v946 = vadd.f32 %v913, %v944
        %v947 = vadd.f32 %v914, %v944
        %v948 = vadd.f32 %v915, %v944
        %v949 = vadd.f32 %v916, %v944
        %v950 = vadd.f32 %v917, %v944
        %v951 = vadd.f32 %v918, %v944
        %v952 = vadd.f32 %v919, %v944
        %v953 = vadd.f32 %v920, %v944
        %v954 = vadd.f32 %v921, %v944
        %v955 = vadd.f32 %v922, %v944
        %v956 = vadd.f32 %v923, %v944
        %v957 = vadd.f32 %v924, %v944
        %v958 = vadd.f32 %v925, %v944
        %v959 = vadd.f32 %v926, %v944
        %v960 = vadd.f32 %v927, %v944
        %v961 = vadd.f32 %v928, %v944
        %v962 = vadd.f32 %v929, %v944
        %v963 = vadd.f32 %v930, %v944
        %v964 = vadd.f32 %v931, %v944
        %v965 = vadd.f32 %v932, %v944
        %v966 = vadd.f32 %v933, %v944
        %v967 = vadd.f32 %v934, %v944
        %v968 = vadd.f32 %v935, %v944
        %v969 = vadd.f32 %v936, %v944
        %v970 = vadd.f32 %v937, %v944
        %v971 = vadd.f32 %v938, %v944
        %v972 = vadd.f32 %v939, %v944
        %v973 = vadd.f32 %v940, %v944
        %v974 = vadd.f32 %v941, %v944
        %v975 = vadd.f32 %v942, %v944
        %v976 = vadd.f32 %v943, %v944
        %v977 = vmax.f32 %v945, 0.0
        %v978 = vmax.f32 %v946, 0.0
        %v979 = vmax.f32 %v947, 0.0
        %v980 = vmax.f32 %v948, 0.0
        %v981 = vmax.f32 %v949, 0.0
        %v982 = vmax.f32 %v950, 0.0
        %v983 = vmax.f32 %v951, 0.0
        %v984 = vmax.f32 %v952, 0.0
        %v985 = vmax.f32 %v953, 0.0
        %v986 = vmax.f32 %v954, 0.0
        %v987 = vmax.f32 %v955, 0.0
        %v988 = vmax.f32 %v956, 0.0
        %v989 = vmax.f32 %v957, 0.0
        %v990 = vmax.f32 %v958, 0.0
        %v991 = vmax.f32 %v959, 0.0
        %v992 = vmax.f32 %v960, 0.0
        %v993 = vmax.f32 %v961, 0.0
        %v994 = vmax.f32 %v962, 0.0
        %v995 = vmax.f32 %v963, 0.0
        %v996 = vmax.f32 %v964, 0.0
        %v997 = vmax.f32 %v965, 0.0
        %v998 = vmax.f32 %v966, 0.0
        %v999 = vmax.f32 %v967, 0.0
        %v1000 = vmax.f32 %v968, 0.0
        %v1001 = vmax.f32 %v969, 0.0
        %v1002 = vmax.f32 %v970, 0.0
        %v1003 = vmax.f32 %v971, 0.0
        %v1004 = vmax.f32 %v972, 0.0
        %v1005 = vmax.f32 %v973, 0.0
        %v1006 = vmax.f32 %v974, 0.0
        %v1007 = vmax.f32 %v975, 0.0
        %v1008 = vmax.f32 %v976, 0.0
        %1009 = vst [vmem:[%s443] sm:$0xff] %v977
        %1010 = vst [vmem:[%s443 + $0x8] sm:$0xff] %v978
        %1011 = vst [vmem:[%s443 + $0x10] sm:$0xff] %v979
        %1012 = vst [vmem:[%s443 + $0x18] sm:$0xff] %v980
        %1013 = vst [vmem:[%s443 + $0x20] sm:$0xff] %v981
        %1014 = vst [vmem:[%s443 + $0x28] sm:$0xff] %v982
        %1015 = vst [vmem:[%s443 + $0x30] sm:$0xff] %v983
        %1016 = vst [vmem:[%s443 + $0x38] sm:$0xff] %v984
        %1017 = vst [vmem:[%s443 + $0x40] sm:$0xff] %v985
        %1018 = vst [vmem:[%s443 + $0x48] sm:$0xff] %v986
        %1019 = vst [vmem:[%s443 + $0x50] sm:$0xff] %v987
        %1020 = vst [vmem:[%s443 + $0x58] sm:$0xff] %v988
        %1021 = vst [vmem:[%s443 + $0x60] sm:$0xff] %v989
        %1022 = vst [vmem:[%s443 + $0x68] sm:$0xff] %v990
        %1023 = vst [vmem:[%s443 + $0x70] sm:$0xff] %v991
        %1024 = vst [vmem:[%s443 + $0x78] sm:$0xff] %v992
        %1025 = vst [vmem:[%s443 + $0x80] sm:$0xff] %v993
        %1026 = vst [vmem:[%s443 + $0x88] sm:$0xff] %v994
        %1027 = vst [vmem:[%s443 + $0x90] sm:$0xff] %v995
        %1028 = vst [vmem:[%s443 + $0x98] sm:$0xff] %v996
        %1029 = vst [vmem:[%s443 + $0xa0] sm:$0xff] %v997
        %1030 = vst [vmem:[%s443 + $0xa8] sm:$0xff] %v998
        %1031 = vst [vmem:[%s443 + $0xb0] sm:$0xff] %v999
        %1032 = vst [vmem:[%s443 + $0xb8] sm:$0xff] %v1000
        %1033 = vst [vmem:[%s443 + $0xc0] sm:$0xff] %v1001
        %1034 = vst [vmem:[%s443 + $0xc8] sm:$0xff] %v1002
        %1035 = vst [vmem:[%s443 + $0xd0] sm:$0xff] %v1003
        %1036 = vst [vmem:[%s443 + $0xd8] sm:$0xff] %v1004
        %1037 = vst [vmem:[%s443 + $0xe0] sm:$0xff] %v1005
        %1038 = vst [vmem:[%s443 + $0xe8] sm:$0xff] %v1006
        %1039 = vst [vmem:[%s443 + $0xf0] sm:$0xff] %v1007
        %1040 = vst [vmem:[%s443 + $0xf8] sm:$0xff] %v1008
        %s1041 = sand.u32 %s72, 1
        %s1042 = scalar_lea.sflag [#allocation3], %s1041
        %s1043 = sand.u32 %s72, 1
        %s1044 = smul.addr %s1043, 256
        %s1045 = scalar_lea.vmem [#allocation6], %s1044
        // Predicated region
        $region71: #{tpu_custom_call.1} parent=61 // pred_check
          %p1046 = pneg %p82
        $region72: #{tpu_custom_call.1} parent=61 // pred_check_branch
          %1048 = sbr.rel (%p1046) target = $region74
        $region73: #{tpu_custom_call.1} parent=61 // pred_region
          %s1049 = smul.u32 32, %s17
          %s1051 = ssub.s32 4096, 4096
          %1052 = vsyncadd %s1042, %s1051
          %s1053 = smul.addr %s1049, 128
          %s1054 = scalar_lea.hbm %s2, %s1053
          %s1055 = sshll.u32 %s1045, 4
          %s1056 = int_to_ptr.vmem [resolvable:$true] %s1055
          %1061 = dma.vmem_to_hbm [thread:$0]  %s1056, 4096, %s1054, %s1042, 128, 128, 8
        $region74: #{tpu_custom_call.1} parent=61 // pred_fallthru
          _
      $region62: #{tpu_custom_call.1} parent=5 // pred_fallthru
        _
      %p1062 = scmp.le.s32.totalorder 2, %s12
      // Predicated region
      $region75: #{tpu_custom_call.1} parent=5 // pred_check
        %p1063 = pneg %p1062
      $region76: #{tpu_custom_call.1} parent=5 // pred_check_branch
        %1065 = sbr.rel (%p1063) target = $region78
      $region77: #{tpu_custom_call.1} parent=5 // pred_region
        %s1066 = ssub.s32 %s12, 2
        // Predicated region
        $region79: #{tpu_custom_call.1} parent=77 // pred_check
          %p1067 = pneg %p88
        $region80: #{tpu_custom_call.1} parent=77 // pred_check_branch
          %1069 = sbr.rel (%p1067) target = $region82
        $region81: #{tpu_custom_call.1} parent=77 // pred_region
          %s1070 = sand.u32 %s73, 1
          %s1071 = scalar_lea.sflag [#allocation3], %s1070
          %s1072 = sand.u32 %s73, 1
          %s1073 = smul.addr %s1072, 256
          %s1074 = scalar_lea.vmem [#allocation6], %s1073
          %1075 = dma.done %s1071, 4096
        $region82: #{tpu_custom_call.1} parent=77 // pred_fallthru
          _
      $region78: #{tpu_custom_call.1} parent=5 // pred_fallthru
        _
    $region6: #{tpu_custom_call.1} parent=1 // loop_footer
      %s16 = sadd.s32 1, %s12
    $region7: #{tpu_custom_call.1} parent=1 // loop_footer_branch
      %11 = sbr.rel target = $region3
    $region8: #{tpu_custom_call.1} parent=1 // loop_exit
      _
    %1076 = vsyncpa [#allocation3], 1
    %s1077 = scalar_lea.sflag [#allocation3], 1
    %1078 = vsyncpa %s1077, 1
    %1079 = vsyncpa [#allocation4], 1
    %s1080 = scalar_lea.sflag [#allocation4], 1
    %1081 = vsyncpa %s1080, 1

</llo_original>
